<compile_context>
chip_gen: v7x
topology: tpu7x:2x2x1
jax: 0.10.0
libtpu: 0.0.40
codegen_flags: <defaults>
</compile_context>

<pallas_src>
import jax
import jax.numpy as jnp
from jax.experimental import pallas as pl
from jax.experimental.pallas import tpu as pltpu


def _round_up(n, m):
    return ((n + m - 1) // m) * m


def _linear_kernel(w_ref, b_ref, x_ref, o_ref):
    """One batch-tile of y = x @ W.T + b, formulated for the VPU.

    w_ref : (OUT, IN)  f32, SMEM-resident scalars
    b_ref : (OUT,)     f32, SMEM-resident scalars
    x_ref : (TB, IN)   streamed row tile of the input (VMEM)
    o_ref : (TB, OUT)  un-padded output tile (VMEM); last dim == full dim
    """
    x = x_ref[...].astype(jnp.float32)
    tb, n_in = x.shape
    n_out = o_ref.shape[1]
    # OUT (=2) and IN (=3) are tiny static constants -> fully unrolled
    # vector-scalar FMAs. No jnp.dot / MXU involvement.
    for j in range(n_out):
        acc = jnp.full((tb, 1), b_ref[j], dtype=jnp.float32)
        for k in range(n_in):
            acc = acc + x[:, k:k + 1] * w_ref[j, k]
        o_ref[:, j:j + 1] = acc.astype(o_ref.dtype)


def linear_forward(x, weight, bias, *, block_b=4096):
    """torch.nn.Linear forward: y = x @ weight.T + bias, weight is (OUT, IN).

    Output dtype follows x.dtype (pass bf16 x to halve HBM traffic on
    v6e/v7x; the kernel always accumulates in f32).
    """
    B, IN = x.shape
    OUT, IN_w = weight.shape
    assert IN_w == IN, (weight.shape, x.shape)
    w = weight.astype(jnp.float32)
    b = bias.astype(jnp.float32)

    # Batch tile:
    #  * multiple of 8 (sublane constraint) or == B when B is tiny,
    #  * >= 2 grid steps when B allows it (v7x 2-TC sharding via "parallel"),
    #  * capped at block_b (see VMEM accounting in the header comment).
    if B <= 8:
        tb = B
    else:
        tb = min(block_b, _round_up((B + 1) // 2, 8))
    grid = (pl.cdiv(B, tb),)

    return pl.pallas_call(
        _linear_kernel,
        out_shape=jax.ShapeDtypeStruct((B, OUT), x.dtype),
        grid=grid,
        in_specs=[
            pl.BlockSpec(memory_space=pltpu.MemorySpace.SMEM),  # weight scalars
            pl.BlockSpec(memory_space=pltpu.MemorySpace.SMEM),  # bias scalars
            pl.BlockSpec((tb, IN), lambda i: (i, 0)),           # stream x rows
        ],
        out_specs=pl.BlockSpec((tb, OUT), lambda i: (i, 0)),    # un-padded (tb, 2)
        compiler_params=pltpu.CompilerParams(
            dimension_semantics=("parallel",)),
    )(w, b, x)


if __name__ == "__main__":
    # Input matching the reference script: shape (2, 3).
    x = jnp.array([[2.0, 3.0, 1.0], [1.0, 2.0, 0.5]], dtype=jnp.float32)

    # Deterministic synthetic parameters (shapes from nn.Linear(3, 2)).
    key = jax.random.PRNGKey(0)
    kw, kb = jax.random.split(key)
    bound = 1.0 / jnp.sqrt(3.0)  # torch's 1/sqrt(fan_in) init bound
    weight = jax.random.uniform(kw, (2, 3), jnp.float32, -bound, bound)
    bias = jax.random.uniform(kb, (2,), jnp.float32, -bound, bound)

    y = linear_forward(x, weight, bias)
    jax.block_until_ready(y)
    y_ref = x @ weight.T + bias
    assert y.shape == (2, 2), y.shape
    assert jnp.allclose(y, y_ref, atol=1e-5), (y, y_ref)

    # Also exercise the tiled path: multi-step grid with a ragged (masked)
    # last block and no wrapper-side padding copies.
    xb = jax.random.normal(jax.random.PRNGKey(1), (300, 3), jnp.float32)
    yb = linear_forward(xb, weight, bias, block_b=128)
    jax.block_until_ready(yb)
    yb_ref = xb @ weight.T + bias
    assert yb.shape == (300, 2), yb.shape
    assert jnp.allclose(yb, yb_ref, atol=1e-5), float(jnp.max(jnp.abs(yb - yb_ref)))

    print("KERNEL_OK")
</pallas_src>

<mosaic_0001>
module attributes {stable_mosaic.version = 11 : i64} {
  func.func @_linear_kernel(%arg0: i32, %arg1: memref<2x3xf32, #tpu.memory_space<smem>>, %arg2: memref<2xf32, #tpu.memory_space<smem>>, %arg3: memref<2x3xf32, #tpu.memory_space<vmem>>, %arg4: memref<2x2xf32, #tpu.memory_space<vmem>>) attributes {dimension_semantics = [#tpu.dimension_semantics<parallel>], iteration_bounds = array<i64: 1>, scalar_prefetch = 0 : i64, scratch_operands = 0 : i64, tpu.core_type = #tpu.core_type<tc>, window_params = [{transform_indices = @transform_0, window_bounds = array<i64: 2, 3>}, {transform_indices = @transform_1, window_bounds = array<i64: 2>}, {transform_indices = @transform_2, window_bounds = array<i64: 2, 3>}, {transform_indices = @transform_3, window_bounds = array<i64: 2, 2>}]} {
    %c0 = arith.constant 0 : index
    %c0_0 = arith.constant 0 : index
    %0 = vector.load %arg3[%c0, %c0_0] : memref<2x3xf32, #tpu.memory_space<vmem>>, vector<2x3xf32>
    %c0_1 = arith.constant 0 : index
    %1 = memref.load %arg2[%c0_1] : memref<2xf32, #tpu.memory_space<smem>>
    %2 = vector.broadcast %1 : f32 to vector<2x1xf32>
    %3 = vector.extract_strided_slice %0 {offsets = [0, 0], sizes = [2, 1], strides = [1, 1]} : vector<2x3xf32> to vector<2x1xf32>
    %c0_2 = arith.constant 0 : index
    %c0_3 = arith.constant 0 : index
    %4 = memref.load %arg1[%c0_2, %c0_3] : memref<2x3xf32, #tpu.memory_space<smem>>
    %5 = vector.broadcast %4 : f32 to vector<2x1xf32>
    %6 = arith.mulf %3, %5 : vector<2x1xf32>
    %7 = arith.addf %2, %6 : vector<2x1xf32>
    %8 = vector.extract_strided_slice %0 {offsets = [0, 1], sizes = [2, 1], strides = [1, 1]} : vector<2x3xf32> to vector<2x1xf32>
    %c0_4 = arith.constant 0 : index
    %c1 = arith.constant 1 : index
    %9 = memref.load %arg1[%c0_4, %c1] : memref<2x3xf32, #tpu.memory_space<smem>>
    %10 = vector.broadcast %9 : f32 to vector<2x1xf32>
    %11 = arith.mulf %8, %10 : vector<2x1xf32>
    %12 = arith.addf %7, %11 : vector<2x1xf32>
    %13 = vector.extract_strided_slice %0 {offsets = [0, 2], sizes = [2, 1], strides = [1, 1]} : vector<2x3xf32> to vector<2x1xf32>
    %c0_5 = arith.constant 0 : index
    %c2 = arith.constant 2 : index
    %14 = memref.load %arg1[%c0_5, %c2] : memref<2x3xf32, #tpu.memory_space<smem>>
    %15 = vector.broadcast %14 : f32 to vector<2x1xf32>
    %16 = arith.mulf %13, %15 : vector<2x1xf32>
    %17 = arith.addf %12, %16 : vector<2x1xf32>
    %c0_6 = arith.constant 0 : index
    %c0_7 = arith.constant 0 : index
    %18 = vector.load %arg4[%c0_6, %c0_7] : memref<2x2xf32, #tpu.memory_space<vmem>>, vector<2x1xf32>
    tpu.vector_store %arg4[%c0_6, %c0_7], %17 {strides = array<i32>} : memref<2x2xf32, #tpu.memory_space<vmem>>, vector<2x1xf32>,
    %c1_8 = arith.constant 1 : index
    %19 = memref.load %arg2[%c1_8] : memref<2xf32, #tpu.memory_space<smem>>
    %20 = vector.broadcast %19 : f32 to vector<2x1xf32>
    %21 = vector.extract_strided_slice %0 {offsets = [0, 0], sizes = [2, 1], strides = [1, 1]} : vector<2x3xf32> to vector<2x1xf32>
    %c1_9 = arith.constant 1 : index
    %c0_10 = arith.constant 0 : index
    %22 = memref.load %arg1[%c1_9, %c0_10] : memref<2x3xf32, #tpu.memory_space<smem>>
    %23 = vector.broadcast %22 : f32 to vector<2x1xf32>
    %24 = arith.mulf %21, %23 : vector<2x1xf32>
    %25 = arith.addf %20, %24 : vector<2x1xf32>
    %26 = vector.extract_strided_slice %0 {offsets = [0, 1], sizes = [2, 1], strides = [1, 1]} : vector<2x3xf32> to vector<2x1xf32>
    %c1_11 = arith.constant 1 : index
    %c1_12 = arith.constant 1 : index
    %27 = memref.load %arg1[%c1_11, %c1_12] : memref<2x3xf32, #tpu.memory_space<smem>>
    %28 = vector.broadcast %27 : f32 to vector<2x1xf32>
    %29 = arith.mulf %26, %28 : vector<2x1xf32>
    %30 = arith.addf %25, %29 : vector<2x1xf32>
    %31 = vector.extract_strided_slice %0 {offsets = [0, 2], sizes = [2, 1], strides = [1, 1]} : vector<2x3xf32> to vector<2x1xf32>
    %c1_13 = arith.constant 1 : index
    %c2_14 = arith.constant 2 : index
    %32 = memref.load %arg1[%c1_13, %c2_14] : memref<2x3xf32, #tpu.memory_space<smem>>
    %33 = vector.broadcast %32 : f32 to vector<2x1xf32>
    %34 = arith.mulf %31, %33 : vector<2x1xf32>
    %35 = arith.addf %30, %34 : vector<2x1xf32>
    %c0_15 = arith.constant 0 : index
    %c1_16 = arith.constant 1 : index
    %36 = vector.load %arg4[%c0_15, %c1_16] : memref<2x2xf32, #tpu.memory_space<vmem>>, vector<2x1xf32>
    tpu.vector_store %arg4[%c0_15, %c1_16], %35 {strides = array<i32>} : memref<2x2xf32, #tpu.memory_space<vmem>>, vector<2x1xf32>,
    return
  }
  func.func @transform_0(%arg0: i32) -> (i32, i32) {
    %c0_i32 = arith.constant 0 : i32
    %c0_i32_0 = arith.constant 0 : i32
    %c0_i32_1 = arith.constant 0 : i32
    return %c0_i32, %c0_i32_0 : i32, i32
  }
  func.func @transform_1(%arg0: i32) -> i32 {
    %c0_i32 = arith.constant 0 : i32
    %c0_i32_0 = arith.constant 0 : i32
    return %c0_i32 : i32
  }
  func.func @transform_2(%arg0: i32) -> (i32, i32) {
    %c0_i32 = arith.constant 0 : i32
    %c0_i32_0 = arith.constant 0 : i32
    return %arg0, %c0_i32 : i32, i32
  }
  func.func @transform_3(%arg0: i32) -> (i32, i32) {
    %c0_i32 = arith.constant 0 : i32
    %c0_i32_0 = arith.constant 0 : i32
    return %arg0, %c0_i32 : i32, i32
  }
}

</mosaic_0001>

<llo_original>
// kernel: tpu_custom_call.1
$region0: #{tpu_custom_call.1}
  #allocation0 [shape = 'u32[]', space=smem, size = 0x4, offset = 0x4, fixed_abs, tag = 'smem constant byte address 0x4 - core index']
  #allocation1 [shape = 'u32[144,128]{1,0:T(1,128)}', space=vmem, size = 0x12000, scoped, tag = 'internal scratch']
  %s0 = inlined_call_operand.hbm [shape: f32[2,3], index: 0, kind: input, shape index: {}]
  %s1 = inlined_call_operand.vmem [shape: f32[2], index: 1, kind: input, shape index: {}]
  %s2 = inlined_call_operand.vmem [shape: f32[2,3], index: 2, kind: input, shape index: {}]
  %s3 = inlined_call_operand.hbm [shape: f32[2,2], index: 3, kind: output, shape index: {}]
  %s4 = sld [smem:[#allocation0]]
  $region30: #{tpu_custom_call.1} parent=0
    _
  %s6 = ssub.s32 1, %s4
  %s7 = scalar_select 0, %s6, %s4
  $region1: #{tpu_custom_call.1} parent=0
    #allocation2 [shape = 'u8[1024]{0}', space=smem, size = 0x400, scoped, tag = 'input window, operand 0, single buffered']
    #allocation3 [shape = 's32[1]{0}', space=sflag, size = 0x4, scoped, tag = 'scoped memory for tpu_custom_call.1']
    #allocation4 [shape = 's32[1]{0}', space=sflag, size = 0x4, scoped, tag = 'scoped memory for tpu_custom_call.1']
    #allocation5 [shape = 's32[1]{0}', space=sflag, size = 0x4, scoped, tag = 'scoped memory for tpu_custom_call.1']
    #allocation6 [shape = 'u8[512]{0}', space=smem, size = 0x200, scoped, tag = 'input window, operand 1, single buffered']
    #allocation7 [shape = 'u8[1024]{0}', space=vmem, size = 0x400, scoped, tag = 'output window, operand 0, single buffered']
    %8 = vsyncpa [#allocation4], 0
    %9 = vsyncpa [#allocation5], 0
    %10 = vsyncpa [#allocation3], 0
    // Predicated region
    $region2: #{tpu_custom_call.1} parent=1 // pred_check
      _
    $region3: #{tpu_custom_call.1} parent=1 // pred_check_branch
      %12 = sbr.rel (0) target = $region5
    $region4: #{tpu_custom_call.1} parent=1 // pred_region
      %s14 = ssub.s32 32, 32
      %15 = vsyncadd [#allocation4], %s14
      %18 = dma.hbm_to_smem %s0, 32, [#allocation2], [#allocation4]
    $region5: #{tpu_custom_call.1} parent=1 // pred_fallthru
      _
    // Predicated region
    $region6: #{tpu_custom_call.1} parent=1 // pred_check
      _
    $region7: #{tpu_custom_call.1} parent=1 // pred_check_branch
      %20 = sbr.rel (0) target = $region9
    $region8: #{tpu_custom_call.1} parent=1 // pred_region
      %s22 = ssub.s32 16, 16
      %23 = vsyncadd [#allocation5], %s22
      %s25 = sshll.u32 %s1, 4
      %s26 = int_to_ptr.vmem [resolvable:$true] %s25
      %28 = dma.vmem_to_smem %s26, 16, [#allocation6], [#allocation5]
    $region9: #{tpu_custom_call.1} parent=1 // pred_fallthru
      _
    // Predicated region
    $region10: #{tpu_custom_call.1} parent=1 // pred_check
      _
    $region11: #{tpu_custom_call.1} parent=1 // pred_check_branch
      %30 = sbr.rel (0) target = $region13
    $region12: #{tpu_custom_call.1} parent=1 // pred_region
      _
    $region13: #{tpu_custom_call.1} parent=1 // pred_fallthru
      _
    // Predicated region
    $region14: #{tpu_custom_call.1} parent=1 // pred_check
      _
    $region15: #{tpu_custom_call.1} parent=1 // pred_check_branch
      %32 = sbr.rel (0) target = $region17
    $region16: #{tpu_custom_call.1} parent=1 // pred_region
      %33 = dma.done [#allocation4], 32
    $region17: #{tpu_custom_call.1} parent=1 // pred_fallthru
      _
    // Predicated region
    $region18: #{tpu_custom_call.1} parent=1 // pred_check
      _
    $region19: #{tpu_custom_call.1} parent=1 // pred_check_branch
      %35 = sbr.rel (0) target = $region21
    $region20: #{tpu_custom_call.1} parent=1 // pred_region
      %36 = dma.done [#allocation5], 16
    $region21: #{tpu_custom_call.1} parent=1 // pred_fallthru
      _
    %37 = sfence
    %v38 = vld [vmem:[%s2] sm:$0x3]
    %s39 = sld [smem:[#allocation6]]
    %v40 = vstv %s39
    %s41 = sld [smem:[#allocation2]]
    %v42 = vstv %s41
    %v43 = vmul.f32 %v38, %v42
    %v44 = vadd.f32 %v40, %v43
    %s45 = sld [smem:[#allocation2 + $0x1]]
    %v46 = vstv %s45
    %v47 = vmul.f32 %v38, %v46
    %49 = vrot.lane.b32.xlu0 %v47, 127
    %v50 = vpop.permute.xlu0 %49
    %v52 = vadd.f32 %v44, %v50
    %s53 = sld [smem:[#allocation2 + $0x2]]
    %v54 = vstv %s53
    %v55 = vmul.f32 %v38, %v54
    %57 = vrot.lane.b32.xlu0 %v55, 126
    %v58 = vpop.permute.xlu0 %57
    %v60 = vadd.f32 %v52, %v58
    %vm61 = vcmask 1024
    %62 = vst.msk [vmem:[#allocation7] sm:$0x3] %vm61, %v60
    %s63 = sld [smem:[#allocation6 + $0x1]]
    %v64 = vstv %s63
    %s65 = sld [smem:[#allocation2 + $0x80]]
    %v66 = vstv %s65
    %v67 = vmul.f32 %v38, %v66
    %v68 = vadd.f32 %v64, %v67
    %s69 = sld [smem:[#allocation2 + $0x81]]
    %v70 = vstv %s69
    %v71 = vmul.f32 %v38, %v70
    %73 = vrot.lane.b32.xlu0 %v71, 127
    %v74 = vpop.permute.xlu0 %73
    %v76 = vadd.f32 %v68, %v74
    %s77 = sld [smem:[#allocation2 + $0x82]]
    %v78 = vstv %s77
    %v79 = vmul.f32 %v38, %v78
    %81 = vrot.lane.b32.xlu0 %v79, 126
    %v82 = vpop.permute.xlu0 %81
    %v84 = vadd.f32 %v76, %v82
    %86 = vrot.lane.b32.xlu0 %v84, 1
    %v87 = vpop.permute.xlu0 %86
    %vm89 = vcmask 9224
    %90 = vst.msk [vmem:[#allocation7] sm:$0x3] %vm89, %v87
    // Predicated region
    $region22: #{tpu_custom_call.1} parent=1 // pred_check
      _
    $region23: #{tpu_custom_call.1} parent=1 // pred_check_branch
      %92 = sbr.rel (0) target = $region25
    $region24: #{tpu_custom_call.1} parent=1 // pred_region
      %s94 = ssub.s32 32, 32
      %95 = vsyncadd [#allocation3], %s94
      %s97 = sshll.u32 [#allocation7], 4
      %s98 = int_to_ptr.vmem [resolvable:$true] %s97
      %100 = dma.vmem_to_hbm [thread:$0]  %s98, 32, %s3, [#allocation3]
    $region25: #{tpu_custom_call.1} parent=1 // pred_fallthru
      _
    // Predicated region
    $region26: #{tpu_custom_call.1} parent=1 // pred_check
      _
    $region27: #{tpu_custom_call.1} parent=1 // pred_check_branch
      %102 = sbr.rel (0) target = $region29
    $region28: #{tpu_custom_call.1} parent=1 // pred_region
      %103 = dma.done [#allocation3], 32
    $region29: #{tpu_custom_call.1} parent=1 // pred_fallthru
      _
    %104 = vsyncpa [#allocation3], 1
    %105 = vsyncpa [#allocation4], 1
    %106 = vsyncpa [#allocation5], 1

</llo_original>
